<compile_context>
chip_gen: v7x
topology: tpu7x:2x2x1
jax: 0.10.0
libtpu: 0.0.40
codegen_flags: <defaults>
</compile_context>

<pallas_src>
import jax
import jax.numpy as jnp
from jax.experimental import pallas as pl
from jax.experimental.pallas import tpu as pltpu


def _classifier_head_kernel(x_ref, w_ref, b_ref, o_ref):
    # x_ref : [B_TILE, C_in, HW]   feature-map tile, NCHW flattened (HW on lanes)
    # w_ref : [C_in, NC_pad]       fused (head_conv . fc) weight, pre-scaled by 1/HW
    # b_ref : [1, NC_pad]          fused bias (padding columns hold -1e30)
    # o_ref : [1, B_TILE, NC_pad]  softmax probabilities (lane-dense store)
    x = x_ref[...].astype(jnp.float32)               # f32 accumulation (bf16-input safe)

    # adaptive_avg_pool2d(., 1) commuted in front of the fused linear layers;
    # the 1/HW factor lives inside w_ref, so a plain sum suffices here.
    pooled = jnp.sum(x, axis=-1)                     # [B_TILE, C_in]  lane-axis reduce (XLU)

    logits = jnp.dot(pooled, w_ref[...],
                     preferred_element_type=jnp.float32) + b_ref[...]

    # softmax over classes (padded columns have logit -1e30 -> prob exactly 0)
    m = jnp.max(logits, axis=-1, keepdims=True)
    e = jnp.exp(logits - m)
    denom = jnp.sum(e, axis=-1, keepdims=True)
    probs = e * pl.reciprocal(denom, approx=True)    # EUP reciprocal

    o_ref[0] = probs.astype(o_ref.dtype)


def classifier_head(x_nchw, conv_w, conv_b, fc_w, fc_b, *, b_tile=None):
    """x_nchw: [B, C_in, H, W]        feature map (NCHW, as produced by the backbone)
       conv_w: [C_head, C_in, 1, 1]   conv_b: [C_head]   (PyTorch Conv2d layout)
       fc_w  : [NC, C_head]           fc_b  : [NC]       (PyTorch Linear layout)
       returns: [B, NC] softmax probabilities."""
    B, C_in, H, W = x_nchw.shape
    C_head = conv_w.shape[0]
    NC = fc_w.shape[0]
    HW = H * W

    # ---- offline fusion of the two linear layers (one-time host/XLA cost) ----
    w1 = conv_w.reshape(C_head, C_in).astype(jnp.float32).T              # [C_in, C_head]
    w2 = fc_w.astype(jnp.float32).T                                      # [C_head, NC]
    w_fused = (w1 @ w2) * (1.0 / HW)                                     # fold pooling scale
    b_fused = conv_b.astype(jnp.float32)[None, :] @ w2 + fc_b.astype(jnp.float32)[None, :]

    # pad class dim to a full 128-lane multiple -> unmasked (lane-dense) output stores
    NC_pad = max(128, ((NC + 127) // 128) * 128)
    w_pad = jnp.zeros((C_in, NC_pad), jnp.float32).at[:, :NC].set(w_fused)
    b_pad = jnp.full((1, NC_pad), -1e30, jnp.float32).at[:, :NC].set(b_fused)

    # ---- no transpose: NCHW -> [B, C_in, HW] is a contiguous (free) reshape ----
    x = x_nchw.reshape(B, C_in, HW)

    # ---- batch tiling: largest tile that fits VMEM, >= 2 grid steps when possible ----
    if b_tile is None:
        itemsize = jnp.dtype(x.dtype).itemsize
        row_bytes = C_in * HW * itemsize
        vmem_budget = 24 * 1024 * 1024                      # headroom under scoped VMEM limit
        max_by_vmem = max(1, vmem_budget // (2 * row_bytes))  # x block is double-buffered
        b_tile = min(B, int(max_by_vmem))
        if B >= 2:
            b_tile = min(b_tile, -(-B // 2))                # >= 2 parallel steps (dual-TC)
    num_tiles = -(-B // b_tile)
    B_pad = num_tiles * b_tile
    if B_pad != B:
        x = jnp.pad(x, ((0, B_pad - B), (0, 0), (0, 0)))

    out = pl.pallas_call(
        _classifier_head_kernel,
        out_shape=jax.ShapeDtypeStruct((num_tiles, b_tile, NC_pad), jnp.float32),
        grid_spec=pltpu.PrefetchScalarGridSpec(
            num_scalar_prefetch=0,
            grid=(num_tiles,),
            in_specs=[
                pl.BlockSpec((b_tile, C_in, HW), lambda t: (t, 0, 0)),
                pl.BlockSpec((C_in, NC_pad), lambda t: (0, 0)),
                pl.BlockSpec((1, NC_pad), lambda t: (0, 0)),
            ],
            out_specs=pl.BlockSpec((1, b_tile, NC_pad), lambda t: (t, 0, 0)),
        ),
        compiler_params=pltpu.CompilerParams(
            dimension_semantics=("parallel",),
            vmem_limit_bytes=32 * 1024 * 1024,
        ),
    )(x, w_pad, b_pad)

    return out.reshape(B_pad, NC_pad)[:B, :NC]


def _reference(x_nchw, conv_w, conv_b, fc_w, fc_b):
    # pure-JAX reference of the torch head (conv -> pool -> fc -> softmax)
    B, C_in, H, W = x_nchw.shape
    C_head = conv_w.shape[0]
    y = jnp.einsum("bchw,oc->bohw", x_nchw.astype(jnp.float32),
                   conv_w.reshape(C_head, C_in).astype(jnp.float32))
    y = y + conv_b.astype(jnp.float32)[None, :, None, None]
    pooled = jnp.mean(y, axis=(2, 3))                                   # [B, C_head]
    logits = pooled @ fc_w.astype(jnp.float32).T + fc_b.astype(jnp.float32)
    return jax.nn.softmax(logits, axis=1)


if __name__ == "__main__":
    # Small, synthetic configuration consistent with the module:
    #   features_channel (backbone output channels) = 16
    #   head_conv_channel = 32, num_classes = 10, spatial = 8x8, batch = 2
    B, C_in, H, W = 2, 16, 8, 8
    C_head, NC = 32, 10

    key = jax.random.PRNGKey(0)
    k_x, k_w1, k_b1, k_w2, k_b2 = jax.random.split(key, 5)

    x = jax.random.normal(k_x, (B, C_in, H, W), dtype=jnp.float32)
    # deterministic synthetic params (PyTorch shapes)
    conv_w = 0.1 * jax.random.normal(k_w1, (C_head, C_in, 1, 1), dtype=jnp.float32)
    conv_b = 0.1 * jax.random.normal(k_b1, (C_head,), dtype=jnp.float32)
    fc_w = 0.1 * jax.random.normal(k_w2, (NC, C_head), dtype=jnp.float32)
    fc_b = 0.1 * jax.random.normal(k_b2, (NC,), dtype=jnp.float32)

    out = classifier_head(x, conv_w, conv_b, fc_w, fc_b)
    out = jax.block_until_ready(out)

    ref = _reference(x, conv_w, conv_b, fc_w, fc_b)
    assert out.shape == (B, NC)
    # approx reciprocal + (exact-algebra) layer fusion -> slightly looser tolerance
    assert jnp.allclose(jnp.sum(out, axis=1), 1.0, atol=2e-3)
    assert jnp.allclose(out, ref, atol=2e-3, rtol=2e-3)

    print("KERNEL_OK")
</pallas_src>

<mosaic_0001>
module attributes {stable_mosaic.version = 11 : i64} {
  func.func @_classifier_head_kernel(%arg0: i32, %arg1: memref<1x16x64xf32, #tpu.memory_space<vmem>>, %arg2: memref<16x128xf32, #tpu.memory_space<vmem>>, %arg3: memref<1x128xf32, #tpu.memory_space<vmem>>, %arg4: memref<1x1x128xf32, #tpu.memory_space<vmem>>) attributes {dimension_semantics = [#tpu.dimension_semantics<parallel>], iteration_bounds = array<i64: 2>, scalar_prefetch = 0 : i64, scratch_operands = 0 : i64, tpu.core_type = #tpu.core_type<tc>, window_params = [{transform_indices = @transform_0, window_bounds = array<i64: 1, 16, 64>}, {pipeline_mode = #tpu.pipeline_mode<synchronous>, transform_indices = @transform_1, window_bounds = array<i64: 16, 128>}, {pipeline_mode = #tpu.pipeline_mode<synchronous>, transform_indices = @transform_2, window_bounds = array<i64: 1, 128>}, {transform_indices = @transform_3, window_bounds = array<i64: 1, 1, 128>}]} {
    %c0 = arith.constant 0 : index
    %c0_0 = arith.constant 0 : index
    %c0_1 = arith.constant 0 : index
    %0 = vector.load %arg1[%c0, %c0_0, %c0_1] : memref<1x16x64xf32, #tpu.memory_space<vmem>>, vector<1x16x64xf32>
    %cst = arith.constant dense<0.000000e+00> : vector<1x16xf32>
    %1 = vector.multi_reduction <add>, %0, %cst [2] : vector<1x16x64xf32> to vector<1x16xf32>
    %c0_2 = arith.constant 0 : index
    %c0_3 = arith.constant 0 : index
    %2 = vector.load %arg2[%c0_2, %c0_3] : memref<16x128xf32, #tpu.memory_space<vmem>>, vector<16x128xf32>
    %cst_4 = arith.constant dense<0.000000e+00> : vector<1x128xf32>
    %3 = tpu.matmul %1, %2, %cst_4 {dimension_numbers = #tpu.dot_dimension_numbers<[1], [0], [0], [1], [0, 0, 1, 1], [], []>} : vector<1x16xf32>, vector<16x128xf32>, vector<1x128xf32> -> vector<1x128xf32>
    %c0_5 = arith.constant 0 : index
    %c0_6 = arith.constant 0 : index
    %4 = vector.load %arg3[%c0_5, %c0_6] : memref<1x128xf32, #tpu.memory_space<vmem>>, vector<1x128xf32>
    %5 = arith.addf %3, %4 : vector<1x128xf32>
    %cst_7 = arith.constant dense<0xFF800000> : vector<1xf32>
    %6 = vector.multi_reduction <maximumf>, %5, %cst_7 [1] : vector<1x128xf32> to vector<1xf32>
    %7 = vector.shape_cast %6 : vector<1xf32> to vector<1x1xf32>
    %8 = vector.broadcast %7 : vector<1x1xf32> to vector<1x128xf32>
    %9 = arith.subf %5, %8 : vector<1x128xf32>
    %10 = math.exp %9 : vector<1x128xf32>
    %cst_8 = arith.constant dense<0.000000e+00> : vector<1xf32>
    %11 = vector.multi_reduction <add>, %10, %cst_8 [1] : vector<1x128xf32> to vector<1xf32>
    %12 = vector.shape_cast %11 : vector<1xf32> to vector<1x1xf32>
    %13 = tpu.reciprocal %12 {approx = true} : vector<1x1xf32> -> vector<1x1xf32>
    %14 = vector.broadcast %13 : vector<1x1xf32> to vector<1x128xf32>
    %15 = arith.mulf %10, %14 : vector<1x128xf32>
    %c0_9 = arith.constant 0 : index
    %c0_10 = arith.constant 0 : index
    %c0_11 = arith.constant 0 : index
    %16 = vector.load %arg4[%c0_9, %c0_10, %c0_11] : memref<1x1x128xf32, #tpu.memory_space<vmem>>, vector<1x1x128xf32>
    %17 = vector.shape_cast %16 : vector<1x1x128xf32> to vector<1x128xf32>
    %18 = vector.shape_cast %15 : vector<1x128xf32> to vector<1x1x128xf32>
    tpu.vector_store %arg4[%c0_9, %c0_10, %c0_11], %18 {strides = array<i32>} : memref<1x1x128xf32, #tpu.memory_space<vmem>>, vector<1x1x128xf32>,
    return
  }
  func.func @transform_0(%arg0: i32) -> (i32, i32, i32) {
    %c0_i32 = arith.constant 0 : i32
    %c0_i32_0 = arith.constant 0 : i32
    %c0_i32_1 = arith.constant 0 : i32
    return %arg0, %c0_i32, %c0_i32_0 : i32, i32, i32
  }
  func.func @transform_1(%arg0: i32) -> (i32, i32) {
    %c0_i32 = arith.constant 0 : i32
    %c0_i32_0 = arith.constant 0 : i32
    %c0_i32_1 = arith.constant 0 : i32
    return %c0_i32, %c0_i32_0 : i32, i32
  }
  func.func @transform_2(%arg0: i32) -> (i32, i32) {
    %c0_i32 = arith.constant 0 : i32
    %c0_i32_0 = arith.constant 0 : i32
    %c0_i32_1 = arith.constant 0 : i32
    return %c0_i32, %c0_i32_0 : i32, i32
  }
  func.func @transform_3(%arg0: i32) -> (i32, i32, i32) {
    %c0_i32 = arith.constant 0 : i32
    %c0_i32_0 = arith.constant 0 : i32
    %c0_i32_1 = arith.constant 0 : i32
    return %arg0, %c0_i32, %c0_i32_0 : i32, i32, i32
  }
}

</mosaic_0001>

<llo_original>
// kernel: tpu_custom_call.1
$region0: #{tpu_custom_call.1}
  #allocation0 [shape = 'u32[]', space=smem, size = 0x4, offset = 0x4, fixed_abs, tag = 'smem constant byte address 0x4 - core index']
  #allocation1 [shape = 'u32[144,128]{1,0:T(1,128)}', space=vmem, size = 0x12000, scoped, tag = 'internal scratch']
  %s0 = inlined_call_operand.hbm [shape: f32[2,16,64], index: 0, kind: input, shape index: {}]
  %s1 = inlined_call_operand.hbm [shape: f32[16,128], index: 1, kind: input, shape index: {}]
  %s2 = inlined_call_operand.vmem [shape: f32[1,128], index: 2, kind: input, shape index: {}]
  %s3 = inlined_call_operand.hbm [shape: f32[2,1,128], index: 3, kind: output, shape index: {}]
  %s4 = sld [smem:[#allocation0]]
  $region53: #{tpu_custom_call.1} parent=0
    _
  %s6 = ssub.s32 1, %s4
  %s7 = scalar_select 0, %s6, %s4
  $region1: #{tpu_custom_call.1} parent=0
    #allocation2 [shape = 'u8[16384]{0}', space=vmem, size = 0x4000, scoped, tag = 'input window, operand 0']
    #allocation3 [shape = 's32[2]{0}', space=sflag, size = 0x8, scoped, tag = 'scoped memory for tpu_custom_call.1']
    #allocation4 [shape = 's32[2]{0}', space=sflag, size = 0x8, scoped, tag = 'scoped memory for tpu_custom_call.1']
    #allocation5 [shape = 'u8[8192]{0}', space=vmem, size = 0x2000, scoped, tag = 'input window, operand 1, single buffered']
    #allocation6 [shape = 's32[1]{0}', space=sflag, size = 0x4, scoped, tag = 'scoped memory for tpu_custom_call.1']
    #allocation7 [shape = 'u8[1024]{0}', space=vmem, size = 0x400, scoped, tag = 'output window, operand 0']
    %8 = vsyncpa [#allocation3], 0
    %s9 = scalar_lea.sflag [#allocation3], 1
    %10 = vsyncpa %s9, 0
    %11 = vsyncpa [#allocation6], 0
    %12 = vsyncpa [#allocation4], 0
    %s13 = scalar_lea.sflag [#allocation4], 1
    %14 = vsyncpa %s13, 0
    loop: start=0, step=1, limit=4
    $region2: #{tpu_custom_call.1} parent=1 // loop_pre_header
      _
    $region3: #{tpu_custom_call.1} parent=1 // loop_header
      %s16 = sphi 0, %s20
      %p17 = scmp.ge.s32.totalorder %s16, 4
      %s26 = sphi 0, %s28
      %s29 = sphi 0, %s26
      %s30 = sphi 0, %s29
      %s46 = sphi 0, %s30
      %s50 = sphi 0, %s50
      %s52 = sphi 0, %s50
      %s53 = sphi 0, %s52
      %s67 = sphi 0, %s53
      %s71 = sphi 0, %s71
      %s73 = sphi 0, %s71
      %s74 = sphi 0, %s73
      %s88 = sphi 0, %s74
      %s94 = sphi 0, %s96
      %s97 = sphi 0, %s94
      %s98 = sphi 0, %s97
      %s114 = sphi 0, %s98
    $region4: #{tpu_custom_call.1} parent=1 // loop_header_branch
      %19 = sbr.rel (%p17) target = $region8
    $region5: #{tpu_custom_call.1} parent=1 // loop_body
      %s21 = ssub.s32 %s16, 1
      %s22 = ssub.s32 %s16, 2
      %s23 = sadd.s32 %s16, 1
      %s24 = ssub.s32 %s16, %s23
      %p25 = scmp.eq.s32.totalorder %s24, 0
      %s27 = sadd.s32 %s26, 1
      %s28 = scalar_select %p25, %s26, %s27
      %p31 = pneg %p25
      %p32 = scmp.eq.s32.totalorder %s16, 1
      %p33 = por %p31, %p32
      %p34 = scmp.ne.s32.totalorder %s26, %s29
      %p35 = scmp.eq.s32.totalorder %s16, 0
      %p36 = por %p34, %p35
      %p37 = scmp.ne.s32.totalorder %s26, %s29
      %p38 = scmp.eq.s32.totalorder %s21, 1
      %p39 = por %p37, %p38
      %p40 = scmp.ne.s32.totalorder %s29, %s30
      %p41 = scmp.eq.s32.totalorder %s21, 0
      %p42 = por %p40, %p41
      %p43 = scmp.ne.s32.totalorder %s29, %s30
      %p44 = scmp.eq.s32.totalorder %s22, 1
      %p45 = por %p43, %p44
      %p47 = scmp.ne.s32.totalorder %s30, %s46
      %p48 = scmp.eq.s32.totalorder %s22, 0
      %p49 = por %p47, %p48
      %s51 = sadd.s32 %s50, 1
      %p54 = scmp.eq.s32.totalorder %s16, 1
      %p55 = scmp.ne.s32.totalorder %s50, %s52
      %p56 = scmp.eq.s32.totalorder %s16, 0
      %p57 = por %p55, %p56
      %p58 = scmp.ne.s32.totalorder %s50, %s52
      %p59 = scmp.eq.s32.totalorder %s21, 1
      %p60 = por %p58, %p59
      %p61 = scmp.ne.s32.totalorder %s52, %s53
      %p62 = scmp.eq.s32.totalorder %s21, 0
      %p63 = por %p61, %p62
      %p64 = scmp.ne.s32.totalorder %s52, %s53
      %p65 = scmp.eq.s32.totalorder %s22, 1
      %p66 = por %p64, %p65
      %p68 = scmp.ne.s32.totalorder %s53, %s67
      %p69 = scmp.eq.s32.totalorder %s22, 0
      %p70 = por %p68, %p69
      %s72 = sadd.s32 %s71, 1
      %p75 = scmp.eq.s32.totalorder %s16, 1
      %p76 = scmp.ne.s32.totalorder %s71, %s73
      %p77 = scmp.eq.s32.totalorder %s16, 0
      %p78 = por %p76, %p77
      %p79 = scmp.ne.s32.totalorder %s71, %s73
      %p80 = scmp.eq.s32.totalorder %s21, 1
      %p81 = por %p79, %p80
      %p82 = scmp.ne.s32.totalorder %s73, %s74
      %p83 = scmp.eq.s32.totalorder %s21, 0
      %p84 = por %p82, %p83
      %p85 = scmp.ne.s32.totalorder %s73, %s74
      %p86 = scmp.eq.s32.totalorder %s22, 1
      %p87 = por %p85, %p86
      %p89 = scmp.ne.s32.totalorder %s74, %s88
      %p90 = scmp.eq.s32.totalorder %s22, 0
      %p91 = por %p89, %p90
      %s92 = ssub.s32 %s16, %s23
      %p93 = scmp.eq.s32.totalorder %s92, 0
      %s95 = sadd.s32 %s94, 1
      %s96 = scalar_select %p93, %s94, %s95
      %p99 = pneg %p93
      %p100 = scmp.eq.s32.totalorder %s16, 1
      %p101 = por %p99, %p100
      %p102 = scmp.ne.s32.totalorder %s94, %s97
      %p103 = scmp.eq.s32.totalorder %s16, 0
      %p104 = por %p102, %p103
      %p105 = scmp.ne.s32.totalorder %s94, %s97
      %p106 = scmp.eq.s32.totalorder %s21, 1
      %p107 = por %p105, %p106
      %p108 = scmp.ne.s32.totalorder %s97, %s98
      %p109 = scmp.eq.s32.totalorder %s21, 0
      %p110 = por %p108, %p109
      %p111 = scmp.ne.s32.totalorder %s97, %s98
      %p112 = scmp.eq.s32.totalorder %s22, 1
      %p113 = por %p111, %p112
      %p115 = scmp.ne.s32.totalorder %s98, %s114
      %p116 = scmp.eq.s32.totalorder %s22, 0
      %p117 = por %p115, %p116
      %p118 = scmp.le.s32.totalorder 1, %s16
      %p119 = scmp.lt.s32.totalorder %s16, 3
      %p120 = pnand %p118, %p119
      %p121 = pneg %p120
      // Predicated region
      $region9: #{tpu_custom_call.1} parent=5 // pred_check
        _
      $region10: #{tpu_custom_call.1} parent=5 // pred_check_branch
        %123 = sbr.rel (%p120) target = $region12
      $region11: #{tpu_custom_call.1} parent=5 // pred_region
        %s124 = ssub.s32 %s16, 1
        // Predicated region
        $region13: #{tpu_custom_call.1} parent=11 // pred_check
          %p125 = pneg %p63
        $region14: #{tpu_custom_call.1} parent=11 // pred_check_branch
          %127 = sbr.rel (%p125) target = $region16
        $region15: #{tpu_custom_call.1} parent=11 // pred_region
          %s129 = ssub.s32 256, 256
          %130 = vsyncadd [#allocation6], %s129
          %s131 = sshll.u32 [#allocation5], 4
          %s132 = int_to_ptr.vmem [resolvable:$true] %s131
          %137 = dma.hbm_to_vmem [thread:$0]  %s1, 256, %s132, [#allocation6], 128, 128, 8
        $region16: #{tpu_custom_call.1} parent=11 // pred_fallthru
          _
        // Predicated region
        $region17: #{tpu_custom_call.1} parent=11 // pred_check
          %p138 = pneg %p84
        $region18: #{tpu_custom_call.1} parent=11 // pred_check_branch
          %140 = sbr.rel (%p138) target = $region20
        $region19: #{tpu_custom_call.1} parent=11 // pred_region
          _
        $region20: #{tpu_custom_call.1} parent=11 // pred_fallthru
          _
      $region12: #{tpu_custom_call.1} parent=5 // pred_fallthru
        _
      %p141 = scmp.lt.s32.totalorder %s16, 2
      // Predicated region
      $region21: #{tpu_custom_call.1} parent=5 // pred_check
        %p142 = pneg %p141
      $region22: #{tpu_custom_call.1} parent=5 // pred_check_branch
        %144 = sbr.rel (%p142) target = $region24
      $region23: #{tpu_custom_call.1} parent=5 // pred_region
        // Predicated region
        $region25: #{tpu_custom_call.1} parent=23 // pred_check
          %p145 = pneg %p36
        $region26: #{tpu_custom_call.1} parent=23 // pred_check_branch
          %147 = sbr.rel (%p145) target = $region28
        $region27: #{tpu_custom_call.1} parent=23 // pred_region
          %s148 = sand.u32 %s26, 1
          %s149 = scalar_lea.sflag [#allocation3], %s148
          %s150 = sand.u32 %s26, 1
          %s151 = smul.addr %s150, 16
          %s152 = scalar_lea.vmem [#allocation2], %s151
          %s154 = ssub.s32 256, 256
          %155 = vsyncadd %s149, %s154
          %s156 = smul.addr %s16, 2
          %s157 = smul.addr %s156, 128
          %s158 = scalar_lea.hbm %s0, %s157
          %s159 = sshll.u32 %s152, 4
          %s160 = int_to_ptr.vmem [resolvable:$true] %s159
          %165 = dma.hbm_to_vmem [thread:$0]  %s158, 256, %s160, %s149, 128, 128, 8
        $region28: #{tpu_custom_call.1} parent=23 // pred_fallthru
          _
      $region24: #{tpu_custom_call.1} parent=5 // pred_fallthru
        _
      %p166 = scmp.le.s32.totalorder 1, %s16
      %p167 = scmp.lt.s32.totalorder %s16, 3
      %p168 = pnand %p166, %p167
      %p169 = pneg %p168
      // Predicated region
      $region29: #{tpu_custom_call.1} parent=5 // pred_check
        _
      $region30: #{tpu_custom_call.1} parent=5 // pred_check_branch
        %171 = sbr.rel (%p168) target = $region32
      $region31: #{tpu_custom_call.1} parent=5 // pred_region
        %s172 = ssub.s32 %s16, 1
        %s173 = sand.u32 %s29, 1
        %s174 = scalar_lea.sflag [#allocation3], %s173
        %s175 = sand.u32 %s29, 1
        %s176 = smul.addr %s175, 16
        %s177 = scalar_lea.vmem [#allocation2], %s176
        // Predicated region
        $region33: #{tpu_custom_call.1} parent=31 // pred_check
          %p178 = pneg %p42
        $region34: #{tpu_custom_call.1} parent=31 // pred_check_branch
          %180 = sbr.rel (%p178) target = $region36
        $region35: #{tpu_custom_call.1} parent=31 // pred_region
          %181 = dma.done %s174, 256
        $region36: #{tpu_custom_call.1} parent=31 // pred_fallthru
          _
        // Predicated region
        $region37: #{tpu_custom_call.1} parent=31 // pred_check
          %p182 = pneg %p63
        $region38: #{tpu_custom_call.1} parent=31 // pred_check_branch
          %184 = sbr.rel (%p182) target = $region40
        $region39: #{tpu_custom_call.1} parent=31 // pred_region
          %185 = dma.done [#allocation6], 256
        $region40: #{tpu_custom_call.1} parent=31 // pred_fallthru
          _
        %s186 = sand.u32 %s29, 1
        %s187 = scalar_lea.sflag [#allocation3], %s186
        %s188 = sand.u32 %s29, 1
        %s189 = smul.addr %s188, 16
        %s190 = scalar_lea.vmem [#allocation2], %s189
        %p191 = pneg %p42
        %p192 = pneg %p39
        %p193 = pneg %p63
        %p194 = pneg %p60
        %p195 = pneg %p84
        %p196 = pneg %p81
        %p197 = pneg %p110
        %p198 = pneg %p107
        %s199 = sand.u32 %s97, 1
        %s200 = scalar_lea.sflag [#allocation4], %s199
        %s201 = sand.u32 %s97, 1
        %s202 = scalar_lea.vmem [#allocation7], %s201
        %v203 = vld [vmem:[%s177] sm:$0xff]
        %v204 = vld [vmem:[%s177 + $0x8] sm:$0xff]
        %vm205 = vcmask 523264
        %v206 = vsel %vm205, %v203, 0.0
        %207 = vadd.xlane.f32.xlu0 %v206
        %v208 = vpop.xlane.xlu0 %207
        %v209 = vsel %vm205, %v204, 0.0
        %210 = vadd.xlane.f32.xlu0 %v209
        %v211 = vpop.xlane.xlu0 %210
        %v212 = vld [vmem:[#allocation5] sm:$0xff]
        %v213 = vld [vmem:[#allocation5 + $0x8] sm:$0xff]
        %v214 = vld [vmem:[%s2] sm:$0x1]
        %v217 = vlaneseq
        %v218 = vand.u32 %v217, 127
        %v219 = vlaneseq
        %v220 = vshrl.u32 %v219, 7
        %v221 = vsub.s32 %v218, %v220
        %v222 = vrot.slane %v208, %v221
        %v223 = vadd.s32 %v218, 4294967288
        %v224 = vlaneseq
        %v225 = vshrl.u32 %v224, 7
        %v226 = vsub.s32 %v223, %v225
        %v227 = vrot.slane %v211, %v226
        %vm228 = vcmask 130112
        %v229 = vsel %vm228, %v227, %v222
        %vm230 = vcmask 130048
        %v231 = vsel %vm230, %v229, 0
        %233 = vmatprep.subr.mxu0 0.0
        %234 = vmatpush1.msra.mxu0 %v212
        %235 = vmatprep.subr.mxu0 0.0
        %236 = vmatpush1.msra.mxu0 %v213
        %237 = vmatprep.subr.mxu0 0.0
        %238 = vmatpush1.msra.mxu0 0.0
        %239 = vmatprep.subr.mxu0 0.0
        %240 = vmatpush1.msra.mxu0 0.0
        %241 = vmatprep.subr.mxu0 0.0
        %242 = vmatpush1.msra.mxu0 0.0
        %243 = vmatprep.subr.mxu0 0.0
        %244 = vmatpush1.msra.mxu0 0.0
        %245 = vmatprep.subr.mxu0 0.0
        %246 = vmatpush1.msra.mxu0 0.0
        %247 = vmatprep.subr.mxu0 0.0
        %248 = vmatpush1.msra.mxu0 0.0
        %249 = vmatprep.subr.mxu0 0.0
        %250 = vmatpush1.msra.mxu0 0.0
        %251 = vmatprep.subr.mxu0 0.0
        %252 = vmatpush1.msra.mxu0 0.0
        %253 = vmatprep.subr.mxu0 0.0
        %254 = vmatpush1.msra.mxu0 0.0
        %255 = vmatprep.subr.mxu0 0.0
        %256 = vmatpush1.msra.mxu0 0.0
        %257 = vmatprep.subr.mxu0 0.0
        %258 = vmatpush1.msra.mxu0 0.0
        %259 = vmatprep.subr.mxu0 0.0
        %260 = vmatpush1.msra.mxu0 0.0
        %261 = vmatprep.subr.mxu0 0.0
        %262 = vmatpush1.msra.mxu0 0.0
        %263 = vmatprep.subr.mxu0 0.0
        %264 = vmatpush1.msra.mxu0 0.0
        %265 = vmatprep.subr.mxu0 0.0
        %266 = vmatpush1.msra.mxu0 0.0
        %267 = vmatprep.subr.mxu0 0.0
        %268 = vmatpush1.msra.mxu0 0.0
        %269 = vmatprep.subr.mxu0 0.0
        %270 = vmatpush1.msra.mxu0 0.0
        %271 = vmatprep.subr.mxu0 0.0
        %272 = vmatpush1.msra.mxu0 0.0
        %273 = vmatprep.subr.mxu0 0.0
        %274 = vmatpush1.msra.mxu0 0.0
        %275 = vmatprep.subr.mxu0 0.0
        %276 = vmatpush1.msra.mxu0 0.0
        %277 = vmatprep.subr.mxu0 0.0
        %278 = vmatpush1.msra.mxu0 0.0
        %279 = vmatprep.subr.mxu0 0.0
        %280 = vmatpush1.msra.mxu0 0.0
        %281 = vmatprep.subr.mxu0 0.0
        %282 = vmatpush1.msra.mxu0 0.0
        %283 = vmatprep.subr.mxu0 0.0
        %284 = vmatpush1.msra.mxu0 0.0
        %285 = vmatprep.subr.mxu0 0.0
        %286 = vmatpush1.msra.mxu0 0.0
        %287 = vmatprep.subr.mxu0 0.0
        %288 = vmatpush1.msra.mxu0 0.0
        %289 = vmatprep.subr.mxu0 0.0
        %290 = vmatpush1.msra.mxu0 0.0
        %291 = vmatprep.subr.mxu0 0.0
        %292 = vmatpush1.msra.mxu0 0.0
        %293 = vmatprep.subr.mxu0 0.0
        %294 = vmatpush1.msra.mxu0 0.0
        %295 = vmatprep.subr.mxu0 0.0
        %296 = vmatpush1.msra.mxu0 0.0
        %297 = vmatprep.mubr.f32.mxu0 0.0
        %298 = vmatmul.mubr.f32.gmra.mrb[0].mxu0 %v231
        %v299 = vpop.f32.mrb[0].mxu0
        %v300 = vadd.f32 %v214, %v299
        %v301 = vpop.f32.mrb[0].mxu0
        %302 = vdwg.mxu0
        %vm303 = vcmask 1040384
        %v304 = vsel %vm303, %v300, -inf
        %305 = vmax.xlane.f32.xlu0 %v304
        %v306 = vpop.xlane.xlu0 %305
        %v307 = vsub.f32 %v300, %v306
        %v308 = vmul.f32 %v307, 1.442695
        %v309 = vpow.pop %v308
        %v310 = vsel %vm303, %v309, 0.0
        %311 = vadd.xlane.f32.xlu0 %v310
        %v312 = vpop.xlane.xlu0 %311
        %v313 = vrcp.pop %v312
        %v314 = vmul.f32 %v309, %v313
        %315 = vst [vmem:[%s202] sm:$0x1] %v314
        %s316 = sand.u32 %s97, 1
        %s317 = scalar_lea.sflag [#allocation4], %s316
        %s318 = sand.u32 %s97, 1
        %s319 = scalar_lea.vmem [#allocation7], %s318
        // Predicated region
        $region41: #{tpu_custom_call.1} parent=31 // pred_check
          %p320 = pneg %p107
        $region42: #{tpu_custom_call.1} parent=31 // pred_check_branch
          %322 = sbr.rel (%p320) target = $region44
        $region43: #{tpu_custom_call.1} parent=31 // pred_region
          %s324 = ssub.s32 16, 16
          %325 = vsyncadd %s317, %s324
          %s326 = smul.addr %s21, 16
          %s327 = scalar_lea.hbm %s3, %s326
          %s329 = sshll.u32 %s319, 4
          %s330 = int_to_ptr.vmem [resolvable:$true] %s329
          %332 = dma.vmem_to_hbm [thread:$0]  %s330, 16, %s327, %s317
        $region44: #{tpu_custom_call.1} parent=31 // pred_fallthru
          _
      $region32: #{tpu_custom_call.1} parent=5 // pred_fallthru
        _
      %p333 = scmp.le.s32.totalorder 2, %s16
      // Predicated region
      $region45: #{tpu_custom_call.1} parent=5 // pred_check
        %p334 = pneg %p333
      $region46: #{tpu_custom_call.1} parent=5 // pred_check_branch
        %336 = sbr.rel (%p334) target = $region48
      $region47: #{tpu_custom_call.1} parent=5 // pred_region
        %s337 = ssub.s32 %s16, 2
        // Predicated region
        $region49: #{tpu_custom_call.1} parent=47 // pred_check
          %p338 = pneg %p113
        $region50: #{tpu_custom_call.1} parent=47 // pred_check_branch
          %340 = sbr.rel (%p338) target = $region52
        $region51: #{tpu_custom_call.1} parent=47 // pred_region
          %s341 = sand.u32 %s98, 1
          %s342 = scalar_lea.sflag [#allocation4], %s341
          %s343 = sand.u32 %s98, 1
          %s344 = scalar_lea.vmem [#allocation7], %s343
          %345 = dma.done %s342, 16
        $region52: #{tpu_custom_call.1} parent=47 // pred_fallthru
          _
      $region48: #{tpu_custom_call.1} parent=5 // pred_fallthru
        _
    $region6: #{tpu_custom_call.1} parent=1 // loop_footer
      %s20 = sadd.s32 1, %s16
    $region7: #{tpu_custom_call.1} parent=1 // loop_footer_branch
      %15 = sbr.rel target = $region3
    $region8: #{tpu_custom_call.1} parent=1 // loop_exit
      _
    %346 = vsyncpa [#allocation3], 1
    %s347 = scalar_lea.sflag [#allocation3], 1
    %348 = vsyncpa %s347, 1
    %349 = vsyncpa [#allocation6], 1
    %350 = vsyncpa [#allocation4], 1
    %s351 = scalar_lea.sflag [#allocation4], 1
    %352 = vsyncpa %s351, 1

</llo_original>
